<compile_context>
chip_gen: v6e
topology: v6e:2x2x1
jax: 0.10.0
libtpu: 0.0.40
codegen_flags: <defaults>
</compile_context>

<pallas_src>
import jax
import jax.numpy as jnp
from jax.experimental import pallas as pl
from jax.experimental.pallas import tpu as pltpu

HIDDEN = 256
LANE = 128


def _round_up(x, m):
    return ((x + m - 1) // m) * m


def value_model_kernel(x_ref, w1_ref, b1_ref, w2_ref, b2_ref, w3_ref, b3_ref,
                       o_ref):
    # x_ref: (TB, state_dim) f32 batch tile (true feature dim -> the HBM->VMEM
    # DMA moves only real bytes).  Weights/biases have constant index_maps, so
    # they are fetched once and stay resident in VMEM across the grid.
    x = x_ref[...].astype(jnp.bfloat16)

    # Layer 1: bf16 MXU matmul (K = state_dim), f32 accumulation; bias/ReLU f32.
    h1 = jnp.dot(x, w1_ref[...], preferred_element_type=jnp.float32)
    h1 = jnp.maximum(h1 + b1_ref[...], 0.0)

    # Layer 2: bf16 MXU matmul, f32 accumulation.
    h2 = jnp.dot(h1.astype(jnp.bfloat16), w2_ref[...],
                 preferred_element_type=jnp.float32)
    h2 = jnp.maximum(h2 + b2_ref[...], 0.0)

    # Layer 3 on the MXU against w3 zero-padded to (256, 128): column 0 holds
    # the real value.  Keeps the output block lane-dense (unmasked stores) and
    # avoids an XLU cross-lane reduction; the MXU has plenty of slack here.
    y = jnp.dot(h2.astype(jnp.bfloat16), w3_ref[...],
                preferred_element_type=jnp.float32)

    # Scalar bias from SMEM (columns 1..127 just carry b3 and are discarded
    # by the wrapper's column-0 slice).
    o_ref[...] = (y + b3_ref[0, 0]).astype(o_ref.dtype)


def value_model_forward(state, params, *, tb=2048):
    """state: (B, state_dim) f32 -> (B, 1) f32."""
    B, state_dim = state.shape
    w1, b1, w2, b2, w3, b3 = (params["w1"], params["b1"], params["w2"],
                              params["b2"], params["w3"], params["b3"])
    assert w1.shape == (state_dim, HIDDEN)

    # Batch tile: primary tuning knob (sweep 1024/2048/4096).  Per-tile work is
    # tiny, so a big TB amortizes the ~0.35us per-grid-step overhead.  Cap it
    # so the grid has >= ~4 steps at large B (keeps both v7x TensorCores fed
    # and the input double-buffer busy); multiple of 128 => multiple of 16.
    tb = max(_round_up(tb, 128), 128)
    TB = min(tb, _round_up(-(-B // 4), 128))
    B_pad = _round_up(B, TB)

    # Only a batch pad (no lane pad, no bf16 HBM copy); no-op when B % TB == 0.
    x = state if B_pad == B else jnp.pad(state, ((0, B_pad - B), (0, 0)))

    grid = (B_pad // TB,)

    out = pl.pallas_call(
        value_model_kernel,
        out_shape=jax.ShapeDtypeStruct((B_pad, LANE), jnp.float32),
        grid=grid,
        in_specs=[
            pl.BlockSpec((TB, state_dim), lambda i: (i, 0)),      # state tile
            pl.BlockSpec((state_dim, HIDDEN), lambda i: (0, 0)),  # w1 (resident)
            pl.BlockSpec((1, HIDDEN), lambda i: (0, 0)),          # b1
            pl.BlockSpec((HIDDEN, HIDDEN), lambda i: (0, 0)),     # w2 (resident)
            pl.BlockSpec((1, HIDDEN), lambda i: (0, 0)),          # b2
            pl.BlockSpec((HIDDEN, LANE), lambda i: (0, 0)),       # w3 (padded cols)
            pl.BlockSpec(memory_space=pltpu.MemorySpace.SMEM),    # b3 scalar
        ],
        out_specs=pl.BlockSpec((TB, LANE), lambda i: (i, 0)),     # lane-dense
        compiler_params=pltpu.CompilerParams(
            dimension_semantics=("parallel",),
            # Actual footprint ~10 MiB at TB=2048; 32 MiB gives headroom and
            # stays well inside v7x's 64 MiB physical VMEM (and v5e/v6e 128).
            vmem_limit_bytes=32 * 1024 * 1024,
        ),
    )(x, w1, b1, w2, b2, w3, b3)

    # Column 0 holds the value; padded batch rows are sliced off here.
    return out[:B, :1]


def _orthogonal(key, shape, gain=1.0):
    """Deterministic orthogonal init (matches torch.nn.init.orthogonal_ semantics)."""
    rows, cols = shape
    n = max(rows, cols)
    a = jax.random.normal(key, (n, n), dtype=jnp.float32)
    q, r = jnp.linalg.qr(a)
    d = jnp.diag(r)
    q = q * jnp.where(d >= 0, 1.0, -1.0)   # sign correction, never zeroes a column
    return gain * q[:rows, :cols]


def init_value_model_params(key, state_dim, init_w=0.003):
    k1, k2, k3, k4 = jax.random.split(key, 4)

    # linear1 / linear2: orthogonal(std=1.0) weights, bias = 1e-6.
    # PyTorch Linear weight is (out, in); store the transpose (in, out) and
    # keep matmul operands in bf16 (f32 MXU accumulation happens in-kernel).
    w1 = _orthogonal(k1, (HIDDEN, state_dim), gain=1.0).T.astype(jnp.bfloat16)  # (state_dim, 256)
    b1 = jnp.full((1, HIDDEN), 1e-6, dtype=jnp.float32)

    w2 = _orthogonal(k2, (HIDDEN, HIDDEN), gain=1.0).T.astype(jnp.bfloat16)     # (256, 256)
    b2 = jnp.full((1, HIDDEN), 1e-6, dtype=jnp.float32)

    # linear3: uniform(-init_w, init_w) weight and bias (overrides orthogonal).
    # Stored transposed and zero-padded to (256, 128) so layer 3 runs on the
    # MXU and yields a lane-dense output block (column 0 = the real value).
    w3_col = jax.random.uniform(k3, (HIDDEN, 1), minval=-init_w, maxval=init_w,
                                dtype=jnp.float32)
    w3 = jnp.pad(w3_col, ((0, 0), (0, LANE - 1))).astype(jnp.bfloat16)          # (256, 128)
    b3 = jax.random.uniform(k4, (1, 1), minval=-init_w, maxval=init_w,
                            dtype=jnp.float32)
    return {"w1": w1, "b1": b1, "w2": w2, "b2": b2, "w3": w3, "b3": b3}


def _reference(state, params):
    """Pure-JAX reference mirroring the kernel's bf16-operand / f32-accumulate math."""
    h = jnp.dot(state.astype(jnp.bfloat16), params["w1"],
                preferred_element_type=jnp.float32)
    h = jnp.maximum(h + params["b1"], 0.0)
    h = jnp.dot(h.astype(jnp.bfloat16), params["w2"],
                preferred_element_type=jnp.float32)
    h = jnp.maximum(h + params["b2"], 0.0)
    y = jnp.dot(h.astype(jnp.bfloat16), params["w3"],
                preferred_element_type=jnp.float32)
    return y[:, :1] + params["b3"][0, 0]


if __name__ == "__main__":
    key = jax.random.PRNGKey(0)
    k_params, k_state = jax.random.split(key)

    batch = 2
    state_dim = 8
    params = init_value_model_params(k_params, state_dim)
    state = jax.random.normal(k_state, (batch, state_dim), dtype=jnp.float32)

    out = jax.block_until_ready(value_model_forward(state, params))
    ref = _reference(state, params)
    assert out.shape == (batch, 1), out.shape
    assert jnp.allclose(out, ref, atol=5e-3, rtol=5e-3), (out, ref)

    # Also exercise the multi-step (pipelined, batch-padded) grid path.
    state2 = jax.random.normal(jax.random.PRNGKey(1), (600, state_dim),
                               dtype=jnp.float32)
    out2 = jax.block_until_ready(value_model_forward(state2, params))
    ref2 = _reference(state2, params)
    assert out2.shape == (600, 1), out2.shape
    assert jnp.allclose(out2, ref2, atol=5e-3, rtol=5e-3)

    print("KERNEL_OK")
</pallas_src>

<mosaic_0001>
module attributes {stable_mosaic.version = 11 : i64} {
  func.func @value_model_kernel(%arg0: i32, %arg1: memref<128x8xf32, #tpu.memory_space<vmem>>, %arg2: memref<8x256xbf16, #tpu.memory_space<vmem>>, %arg3: memref<1x256xf32, #tpu.memory_space<vmem>>, %arg4: memref<256x256xbf16, #tpu.memory_space<vmem>>, %arg5: memref<1x256xf32, #tpu.memory_space<vmem>>, %arg6: memref<256x128xbf16, #tpu.memory_space<vmem>>, %arg7: memref<1x1xf32, #tpu.memory_space<smem>>, %arg8: memref<128x128xf32, #tpu.memory_space<vmem>>) attributes {dimension_semantics = [#tpu.dimension_semantics<parallel>], iteration_bounds = array<i64: 1>, scalar_prefetch = 0 : i64, scratch_operands = 0 : i64, tpu.core_type = #tpu.core_type<tc>, window_params = [{transform_indices = @transform_0, window_bounds = array<i64: 128, 8>}, {pipeline_mode = #tpu.pipeline_mode<synchronous>, transform_indices = @transform_1, window_bounds = array<i64: 8, 256>}, {pipeline_mode = #tpu.pipeline_mode<synchronous>, transform_indices = @transform_2, window_bounds = array<i64: 1, 256>}, {pipeline_mode = #tpu.pipeline_mode<synchronous>, transform_indices = @transform_3, window_bounds = array<i64: 256, 256>}, {pipeline_mode = #tpu.pipeline_mode<synchronous>, transform_indices = @transform_4, window_bounds = array<i64: 1, 256>}, {pipeline_mode = #tpu.pipeline_mode<synchronous>, transform_indices = @transform_5, window_bounds = array<i64: 256, 128>}, {transform_indices = @transform_6, window_bounds = array<i64: 1, 1>}, {transform_indices = @transform_7, window_bounds = array<i64: 128, 128>}]} {
    %c0 = arith.constant 0 : index
    %c0_0 = arith.constant 0 : index
    %0 = vector.load %arg1[%c0, %c0_0] : memref<128x8xf32, #tpu.memory_space<vmem>>, vector<128x8xf32>
    %1 = arith.truncf %0 : vector<128x8xf32> to vector<128x8xbf16>
    %c0_1 = arith.constant 0 : index
    %c0_2 = arith.constant 0 : index
    %2 = vector.load %arg2[%c0_1, %c0_2] : memref<8x256xbf16, #tpu.memory_space<vmem>>, vector<8x256xbf16>
    %cst = arith.constant dense<0.000000e+00> : vector<128x256xf32>
    %3 = tpu.matmul %1, %2, %cst {dimension_numbers = #tpu.dot_dimension_numbers<[1], [0], [0], [1], [0, 0, 1, 1], [], []>} : vector<128x8xbf16>, vector<8x256xbf16>, vector<128x256xf32> -> vector<128x256xf32>
    %c0_3 = arith.constant 0 : index
    %c0_4 = arith.constant 0 : index
    %4 = vector.load %arg3[%c0_3, %c0_4] : memref<1x256xf32, #tpu.memory_space<vmem>>, vector<1x256xf32>
    %5 = vector.broadcast %4 : vector<1x256xf32> to vector<128x256xf32>
    %6 = arith.addf %3, %5 : vector<128x256xf32>
    %cst_5 = arith.constant 0.000000e+00 : f32
    %7 = vector.broadcast %cst_5 : f32 to vector<128x256xf32>
    %8 = arith.maximumf %6, %7 : vector<128x256xf32>
    %9 = arith.truncf %8 : vector<128x256xf32> to vector<128x256xbf16>
    %c0_6 = arith.constant 0 : index
    %c0_7 = arith.constant 0 : index
    %10 = vector.load %arg4[%c0_6, %c0_7] : memref<256x256xbf16, #tpu.memory_space<vmem>>, vector<256x256xbf16>
    %cst_8 = arith.constant dense<0.000000e+00> : vector<128x256xf32>
    %11 = tpu.matmul %9, %10, %cst_8 {dimension_numbers = #tpu.dot_dimension_numbers<[1], [0], [0], [1], [0, 0, 1, 1], [], []>} : vector<128x256xbf16>, vector<256x256xbf16>, vector<128x256xf32> -> vector<128x256xf32>
    %c0_9 = arith.constant 0 : index
    %c0_10 = arith.constant 0 : index
    %12 = vector.load %arg5[%c0_9, %c0_10] : memref<1x256xf32, #tpu.memory_space<vmem>>, vector<1x256xf32>
    %13 = vector.broadcast %12 : vector<1x256xf32> to vector<128x256xf32>
    %14 = arith.addf %11, %13 : vector<128x256xf32>
    %cst_11 = arith.constant 0.000000e+00 : f32
    %15 = vector.broadcast %cst_11 : f32 to vector<128x256xf32>
    %16 = arith.maximumf %14, %15 : vector<128x256xf32>
    %17 = arith.truncf %16 : vector<128x256xf32> to vector<128x256xbf16>
    %c0_12 = arith.constant 0 : index
    %c0_13 = arith.constant 0 : index
    %18 = vector.load %arg6[%c0_12, %c0_13] : memref<256x128xbf16, #tpu.memory_space<vmem>>, vector<256x128xbf16>
    %cst_14 = arith.constant dense<0.000000e+00> : vector<128x128xf32>
    %19 = tpu.matmul %17, %18, %cst_14 {dimension_numbers = #tpu.dot_dimension_numbers<[1], [0], [0], [1], [0, 0, 1, 1], [], []>} : vector<128x256xbf16>, vector<256x128xbf16>, vector<128x128xf32> -> vector<128x128xf32>
    %c0_15 = arith.constant 0 : index
    %c0_16 = arith.constant 0 : index
    %20 = memref.load %arg7[%c0_15, %c0_16] : memref<1x1xf32, #tpu.memory_space<smem>>
    %21 = vector.broadcast %20 : f32 to vector<128x128xf32>
    %22 = arith.addf %19, %21 : vector<128x128xf32>
    %c0_17 = arith.constant 0 : index
    %c0_18 = arith.constant 0 : index
    %23 = vector.load %arg8[%c0_17, %c0_18] : memref<128x128xf32, #tpu.memory_space<vmem>>, vector<128x128xf32>
    tpu.vector_store %arg8[%c0_17, %c0_18], %22 {strides = array<i32>} : memref<128x128xf32, #tpu.memory_space<vmem>>, vector<128x128xf32>,
    return
  }
  func.func @transform_0(%arg0: i32) -> (i32, i32) {
    %c0_i32 = arith.constant 0 : i32
    %c0_i32_0 = arith.constant 0 : i32
    return %arg0, %c0_i32 : i32, i32
  }
  func.func @transform_1(%arg0: i32) -> (i32, i32) {
    %c0_i32 = arith.constant 0 : i32
    %c0_i32_0 = arith.constant 0 : i32
    %c0_i32_1 = arith.constant 0 : i32
    return %c0_i32, %c0_i32_0 : i32, i32
  }
  func.func @transform_2(%arg0: i32) -> (i32, i32) {
    %c0_i32 = arith.constant 0 : i32
    %c0_i32_0 = arith.constant 0 : i32
    %c0_i32_1 = arith.constant 0 : i32
    return %c0_i32, %c0_i32_0 : i32, i32
  }
  func.func @transform_3(%arg0: i32) -> (i32, i32) {
    %c0_i32 = arith.constant 0 : i32
    %c0_i32_0 = arith.constant 0 : i32
    %c0_i32_1 = arith.constant 0 : i32
    return %c0_i32, %c0_i32_0 : i32, i32
  }
  func.func @transform_4(%arg0: i32) -> (i32, i32) {
    %c0_i32 = arith.constant 0 : i32
    %c0_i32_0 = arith.constant 0 : i32
    %c0_i32_1 = arith.constant 0 : i32
    return %c0_i32, %c0_i32_0 : i32, i32
  }
  func.func @transform_5(%arg0: i32) -> (i32, i32) {
    %c0_i32 = arith.constant 0 : i32
    %c0_i32_0 = arith.constant 0 : i32
    %c0_i32_1 = arith.constant 0 : i32
    return %c0_i32, %c0_i32_0 : i32, i32
  }
  func.func @transform_6(%arg0: i32) -> (i32, i32) {
    %c0_i32 = arith.constant 0 : i32
    %c0_i32_0 = arith.constant 0 : i32
    %c0_i32_1 = arith.constant 0 : i32
    return %c0_i32, %c0_i32_0 : i32, i32
  }
  func.func @transform_7(%arg0: i32) -> (i32, i32) {
    %c0_i32 = arith.constant 0 : i32
    %c0_i32_0 = arith.constant 0 : i32
    return %arg0, %c0_i32 : i32, i32
  }
}

</mosaic_0001>

<llo_original>
// kernel: tpu_custom_call.1
$region0: #{tpu_custom_call.1}
  #allocation0 [shape = 'u32[]', space=smem, size = 0x4, offset = 0x4, fixed_abs, tag = 'smem constant byte address 0x4 - core index']
  #allocation1 [shape = 'u32[144,128]{1,0:T(1,128)}', space=vmem, size = 0x12000, scoped, tag = 'internal scratch']
  #allocation2 [shape = 'f32[1,1]{1,0:T(1,128)S(6)}', space=smem, size = 0x200, scoped, tag = 'scoped memory for tpu_custom_call.1']
  %s0 = inlined_call_operand.vmem [shape: f32[128,8], index: 0, kind: input, shape index: {}]
  %s1 = inlined_call_operand.vmem [shape: bf16[8,256], index: 1, kind: input, shape index: {}]
  %s2 = inlined_call_operand.vmem [shape: f32[1,256], index: 2, kind: input, shape index: {}]
  %s3 = inlined_call_operand.hbm [shape: bf16[256,256], index: 3, kind: input, shape index: {}]
  %s4 = inlined_call_operand.vmem [shape: f32[1,256], index: 4, kind: input, shape index: {}]
  %s5 = inlined_call_operand.vmem [shape: bf16[256,128], index: 5, kind: input, shape index: {}]
  %s6 = inlined_call_operand.<no memory space> [shape: f32[1,1], index: 6, kind: input, shape index: {}]
  %s7 = inlined_call_operand.hbm [shape: f32[128,128], index: 7, kind: output, shape index: {}]
  %s8 = sld [smem:[#allocation0]]
  $region42: #{tpu_custom_call.1} parent=0
    _
  %s10 = ssub.s32 1, %s8
  %s11 = scalar_select 0, %s10, %s8
  %12 = sst [smem:[#allocation2]] %s6
  $region1: #{tpu_custom_call.1} parent=0
    #allocation3 [shape = 'u8[131072]{0}', space=vmem, size = 0x20000, scoped, tag = 'input window, operand 3, single buffered']
    #allocation4 [shape = 's32[1]{0}', space=sflag, size = 0x4, scoped, tag = 'scoped memory for tpu_custom_call.1']
    #allocation5 [shape = 's32[1]{0}', space=sflag, size = 0x4, scoped, tag = 'scoped memory for tpu_custom_call.1']
    #allocation6 [shape = 'u8[65536]{0}', space=vmem, size = 0x10000, scoped, tag = 'output window, operand 0, single buffered']
    %13 = vsyncpa [#allocation4], 0
    %14 = vsyncpa [#allocation5], 0
    // Predicated region
    $region2: #{tpu_custom_call.1} parent=1 // pred_check
      _
    $region3: #{tpu_custom_call.1} parent=1 // pred_check_branch
      %16 = sbr.rel (0) target = $region5
    $region4: #{tpu_custom_call.1} parent=1 // pred_region
      _
    $region5: #{tpu_custom_call.1} parent=1 // pred_fallthru
      _
    // Predicated region
    $region6: #{tpu_custom_call.1} parent=1 // pred_check
      _
    $region7: #{tpu_custom_call.1} parent=1 // pred_check_branch
      %18 = sbr.rel (0) target = $region9
    $region8: #{tpu_custom_call.1} parent=1 // pred_region
      _
    $region9: #{tpu_custom_call.1} parent=1 // pred_fallthru
      _
    // Predicated region
    $region10: #{tpu_custom_call.1} parent=1 // pred_check
      _
    $region11: #{tpu_custom_call.1} parent=1 // pred_check_branch
      %20 = sbr.rel (0) target = $region13
    $region12: #{tpu_custom_call.1} parent=1 // pred_region
      _
    $region13: #{tpu_custom_call.1} parent=1 // pred_fallthru
      _
    // Predicated region
    $region14: #{tpu_custom_call.1} parent=1 // pred_check
      _
    $region15: #{tpu_custom_call.1} parent=1 // pred_check_branch
      %22 = sbr.rel (0) target = $region17
    $region16: #{tpu_custom_call.1} parent=1 // pred_region
      %s24 = ssub.s32 4096, 4096
      %25 = vsyncadd [#allocation4], %s24
      %s26 = sshll.u32 [#allocation3], 4
      %s27 = int_to_ptr.vmem [resolvable:$true] %s26
      %32 = dma.hbm_to_vmem [thread:$0]  %s3, 4096, %s27, [#allocation4], 128, 128, 8
    $region17: #{tpu_custom_call.1} parent=1 // pred_fallthru
      _
    // Predicated region
    $region18: #{tpu_custom_call.1} parent=1 // pred_check
      _
    $region19: #{tpu_custom_call.1} parent=1 // pred_check_branch
      %34 = sbr.rel (0) target = $region21
    $region20: #{tpu_custom_call.1} parent=1 // pred_region
      _
    $region21: #{tpu_custom_call.1} parent=1 // pred_fallthru
      _
    // Predicated region
    $region22: #{tpu_custom_call.1} parent=1 // pred_check
      _
    $region23: #{tpu_custom_call.1} parent=1 // pred_check_branch
      %36 = sbr.rel (0) target = $region25
    $region24: #{tpu_custom_call.1} parent=1 // pred_region
      _
    $region25: #{tpu_custom_call.1} parent=1 // pred_fallthru
      _
    // Predicated region
    $region26: #{tpu_custom_call.1} parent=1 // pred_check
      _
    $region27: #{tpu_custom_call.1} parent=1 // pred_check_branch
      %38 = sbr.rel (0) target = $region29
    $region28: #{tpu_custom_call.1} parent=1 // pred_region
      _
    $region29: #{tpu_custom_call.1} parent=1 // pred_fallthru
      _
    // Predicated region
    $region30: #{tpu_custom_call.1} parent=1 // pred_check
      _
    $region31: #{tpu_custom_call.1} parent=1 // pred_check_branch
      %40 = sbr.rel (0) target = $region33
    $region32: #{tpu_custom_call.1} parent=1 // pred_region
      %41 = dma.done [#allocation4], 4096
    $region33: #{tpu_custom_call.1} parent=1 // pred_fallthru
      _
    %v43 = vld [vmem:[%s0] sm:$0xff]
    %v44 = vld [vmem:[%s0 + $0x8] sm:$0xff]
    %v45 = vld [vmem:[%s0 + $0x10] sm:$0xff]
    %v46 = vld [vmem:[%s0 + $0x18] sm:$0xff]
    %v47 = vld [vmem:[%s0 + $0x20] sm:$0xff]
    %v48 = vld [vmem:[%s0 + $0x28] sm:$0xff]
    %v49 = vld [vmem:[%s0 + $0x30] sm:$0xff]
    %v50 = vld [vmem:[%s0 + $0x38] sm:$0xff]
    %v51 = vld [vmem:[%s0 + $0x40] sm:$0xff]
    %v52 = vld [vmem:[%s0 + $0x48] sm:$0xff]
    %v53 = vld [vmem:[%s0 + $0x50] sm:$0xff]
    %v54 = vld [vmem:[%s0 + $0x58] sm:$0xff]
    %v55 = vld [vmem:[%s0 + $0x60] sm:$0xff]
    %v56 = vld [vmem:[%s0 + $0x68] sm:$0xff]
    %v57 = vld [vmem:[%s0 + $0x70] sm:$0xff]
    %v58 = vld [vmem:[%s0 + $0x78] sm:$0xff]
    %v59 = vpack.c.bf16 %v44, %v43
    %v60 = vpack.c.bf16 %v46, %v45
    %v61 = vpack.c.bf16 %v48, %v47
    %v62 = vpack.c.bf16 %v50, %v49
    %v63 = vpack.c.bf16 %v52, %v51
    %v64 = vpack.c.bf16 %v54, %v53
    %v65 = vpack.c.bf16 %v56, %v55
    %v66 = vpack.c.bf16 %v58, %v57
    %v67 = vld [vmem:[%s1] sm:$0xff]
    %v68 = vld [vmem:[%s2] sm:$0x3]
    %v70 = vlaneseq
    %v71 = vshrl.u32 %v70, 7
    %v72 = vsub.s32 0, %v71
    %v73 = vrot.slane %v68, %v72
    %v74 = vlaneseq
    %v75 = vshrl.u32 %v74, 7
    %v76 = vsub.s32 1, %v75
    %v77 = vrot.slane %v68, %v76
    %v81 = vunpack.c.l.b16 %v67
    %v82 = vunpack.c.h.b16 %v67
    %v83 = vpack.c.b16 %v81, %v81
    %v84 = vpack.c.b16 %v82, %v82
    %vm85 = vcmask 64512
    %v87 = vsel %vm85, %v59, 0
    %v90 = vsel %vm85, %v60, 0
    %v93 = vsel %vm85, %v61, 0
    %v96 = vsel %vm85, %v62, 0
    %v99 = vsel %vm85, %v63, 0
    %v102 = vsel %vm85, %v64, 0
    %v105 = vsel %vm85, %v65, 0
    %v108 = vsel %vm85, %v66, 0
    %vm110 = vcmask 1043456
    %v112 = vsel %vm110, %v83, 0
    %v115 = vsel %vm110, %v84, 0
    %117 = vmatprep.subr.bf16.mxu0 0
    %118 = vmatpush1.bf16.msra.mxu0 0
    %119 = vmatprep.subr.bf16.mxu0 0
    %120 = vmatpush1.bf16.msra.mxu0 0
    %121 = vmatprep.subr.bf16.mxu0 0
    %122 = vmatpush1.bf16.msra.mxu0 0
    %123 = vmatprep.subr.bf16.mxu0 0
    %124 = vmatpush1.bf16.msra.mxu0 0
    %125 = vmatprep.subr.bf16.mxu0 0
    %126 = vmatpush1.bf16.msra.mxu0 0
    %127 = vmatprep.subr.bf16.mxu0 0
    %128 = vmatpush1.bf16.msra.mxu0 0
    %129 = vmatprep.subr.bf16.mxu0 0
    %130 = vmatpush1.bf16.msra.mxu0 0
    %131 = vmatprep.subr.bf16.mxu0 %v115
    %132 = vmatpush1.bf16.msra.mxu0 %v112
    %133 = vmatprep.subr.bf16.mxu0 0
    %134 = vmatpush2.bf16.msra.mxu0 0
    %135 = vmatprep.subr.bf16.mxu0 0
    %136 = vmatpush2.bf16.msra.mxu0 0
    %137 = vmatprep.subr.bf16.mxu0 0
    %138 = vmatpush2.bf16.msra.mxu0 0
    %139 = vmatprep.subr.bf16.mxu0 0
    %140 = vmatpush2.bf16.msra.mxu0 0
    %141 = vmatprep.subr.bf16.mxu0 0
    %142 = vmatpush2.bf16.msra.mxu0 0
    %143 = vmatprep.subr.bf16.mxu0 0
    %144 = vmatpush2.bf16.msra.mxu0 0
    %145 = vmatprep.subr.bf16.mxu0 0
    %146 = vmatpush2.bf16.msra.mxu0 0
    %147 = vmatprep.subr.bf16.mxu0 0
    %148 = vmatpush2.bf16.msra.mxu0 0
    %149 = vmatprep.mubr.bf16.mxu0 0
    %150 = vmatmul.mubr.bf16.gmra.mxu0 %v87
    %v151 = vpop.f32.mrf.mxu0
    %v152 = vadd.f32 %v73, %v151
    %v153 = vpop.f32.mrf.mxu0
    %v154 = vadd.f32 %v77, %v153
    %v155 = vpop.f32.mrf.mxu0
    %v156 = vadd.f32 %v73, %v155
    %v157 = vpop.f32.mrf.mxu0
    %v158 = vadd.f32 %v77, %v157
    %159 = vmatprep.mubr.bf16.mxu0 0
    %160 = vmatmul.mubr.bf16.gmra.mxu0 %v90
    %v161 = vpop.f32.mrf.mxu0
    %v162 = vadd.f32 %v73, %v161
    %v163 = vpop.f32.mrf.mxu0
    %v164 = vadd.f32 %v77, %v163
    %v165 = vpop.f32.mrf.mxu0
    %v166 = vadd.f32 %v73, %v165
    %v167 = vpop.f32.mrf.mxu0
    %v168 = vadd.f32 %v77, %v167
    %169 = vmatprep.mubr.bf16.mxu0 0
    %170 = vmatmul.mubr.bf16.gmra.mxu0 %v93
    %v171 = vpop.f32.mrf.mxu0
    %v172 = vadd.f32 %v73, %v171
    %v173 = vpop.f32.mrf.mxu0
    %v174 = vadd.f32 %v77, %v173
    %v175 = vpop.f32.mrf.mxu0
    %v176 = vadd.f32 %v73, %v175
    %v177 = vpop.f32.mrf.mxu0
    %v178 = vadd.f32 %v77, %v177
    %179 = vmatprep.mubr.bf16.mxu0 0
    %180 = vmatmul.mubr.bf16.gmra.mxu0 %v96
    %v181 = vpop.f32.mrf.mxu0
    %v182 = vadd.f32 %v73, %v181
    %v183 = vpop.f32.mrf.mxu0
    %v184 = vadd.f32 %v77, %v183
    %v185 = vpop.f32.mrf.mxu0
    %v186 = vadd.f32 %v73, %v185
    %v187 = vpop.f32.mrf.mxu0
    %v188 = vadd.f32 %v77, %v187
    %189 = vmatprep.mubr.bf16.mxu0 0
    %190 = vmatmul.mubr.bf16.gmra.mxu0 %v99
    %v191 = vpop.f32.mrf.mxu0
    %v192 = vadd.f32 %v73, %v191
    %v193 = vpop.f32.mrf.mxu0
    %v194 = vadd.f32 %v77, %v193
    %v195 = vpop.f32.mrf.mxu0
    %v196 = vadd.f32 %v73, %v195
    %v197 = vpop.f32.mrf.mxu0
    %v198 = vadd.f32 %v77, %v197
    %199 = vmatprep.mubr.bf16.mxu0 0
    %200 = vmatmul.mubr.bf16.gmra.mxu0 %v102
    %v201 = vpop.f32.mrf.mxu0
    %v202 = vadd.f32 %v73, %v201
    %v203 = vpop.f32.mrf.mxu0
    %v204 = vadd.f32 %v77, %v203
    %v205 = vpop.f32.mrf.mxu0
    %v206 = vadd.f32 %v73, %v205
    %v207 = vpop.f32.mrf.mxu0
    %v208 = vadd.f32 %v77, %v207
    %209 = vmatprep.mubr.bf16.mxu0 0
    %210 = vmatmul.mubr.bf16.gmra.mxu0 %v105
    %v211 = vpop.f32.mrf.mxu0
    %v212 = vadd.f32 %v73, %v211
    %v213 = vpop.f32.mrf.mxu0
    %v214 = vadd.f32 %v77, %v213
    %v215 = vpop.f32.mrf.mxu0
    %v216 = vadd.f32 %v73, %v215
    %v217 = vpop.f32.mrf.mxu0
    %v218 = vadd.f32 %v77, %v217
    %219 = vmatprep.mubr.bf16.mxu0 0
    %220 = vmatmul.mubr.bf16.gmra.mxu0 %v108
    %v221 = vpop.f32.mrf.mxu0
    %v222 = vadd.f32 %v73, %v221
    %v223 = vpop.f32.mrf.mxu0
    %v224 = vadd.f32 %v77, %v223
    %v225 = vpop.f32.mrf.mxu0
    %v226 = vadd.f32 %v73, %v225
    %v227 = vpop.f32.mrf.mxu0
    %v228 = vadd.f32 %v77, %v227
    %229 = vdwg.mxu0
    %v230 = vmax.f32 %v152, 0.0
    %v231 = vmax.f32 %v154, 0.0
    %v232 = vmax.f32 %v156, 0.0
    %v233 = vmax.f32 %v158, 0.0
    %v234 = vmax.f32 %v162, 0.0
    %v235 = vmax.f32 %v164, 0.0
    %v236 = vmax.f32 %v166, 0.0
    %v237 = vmax.f32 %v168, 0.0
    %v238 = vmax.f32 %v172, 0.0
    %v239 = vmax.f32 %v174, 0.0
    %v240 = vmax.f32 %v176, 0.0
    %v241 = vmax.f32 %v178, 0.0
    %v242 = vmax.f32 %v182, 0.0
    %v243 = vmax.f32 %v184, 0.0
    %v244 = vmax.f32 %v186, 0.0
    %v245 = vmax.f32 %v188, 0.0
    %v246 = vmax.f32 %v192, 0.0
    %v247 = vmax.f32 %v194, 0.0
    %v248 = vmax.f32 %v196, 0.0
    %v249 = vmax.f32 %v198, 0.0
    %v250 = vmax.f32 %v202, 0.0
    %v251 = vmax.f32 %v204, 0.0
    %v252 = vmax.f32 %v206, 0.0
    %v253 = vmax.f32 %v208, 0.0
    %v254 = vmax.f32 %v212, 0.0
    %v255 = vmax.f32 %v214, 0.0
    %v256 = vmax.f32 %v216, 0.0
    %v257 = vmax.f32 %v218, 0.0
    %v258 = vmax.f32 %v222, 0.0
    %v259 = vmax.f32 %v224, 0.0
    %v260 = vmax.f32 %v226, 0.0
    %v261 = vmax.f32 %v228, 0.0
    %v262 = vpack.c.bf16 %v232, %v230
    %v263 = vpack.c.bf16 %v233, %v231
    %v264 = vpack.c.bf16 %v236, %v234
    %v265 = vpack.c.bf16 %v237, %v235
    %v266 = vpack.c.bf16 %v240, %v238
    %v267 = vpack.c.bf16 %v241, %v239
    %v268 = vpack.c.bf16 %v244, %v242
    %v269 = vpack.c.bf16 %v245, %v243
    %v270 = vpack.c.bf16 %v248, %v246
    %v271 = vpack.c.bf16 %v249, %v247
    %v272 = vpack.c.bf16 %v252, %v250
    %v273 = vpack.c.bf16 %v253, %v251
    %v274 = vpack.c.bf16 %v256, %v254
    %v275 = vpack.c.bf16 %v257, %v255
    %v276 = vpack.c.bf16 %v260, %v258
    %v277 = vpack.c.bf16 %v261, %v259
    %v278 = vld [vmem:[#allocation3] sm:$0xff]
    %v279 = vld [vmem:[#allocation3 + $0x8] sm:$0xff]
    %v280 = vld [vmem:[#allocation3 + $0x10] sm:$0xff]
    %v281 = vld [vmem:[#allocation3 + $0x18] sm:$0xff]
    %v282 = vld [vmem:[#allocation3 + $0x20] sm:$0xff]
    %v283 = vld [vmem:[#allocation3 + $0x28] sm:$0xff]
    %v284 = vld [vmem:[#allocation3 + $0x30] sm:$0xff]
    %v285 = vld [vmem:[#allocation3 + $0x38] sm:$0xff]
    %v286 = vld [vmem:[#allocation3 + $0x40] sm:$0xff]
    %v287 = vld [vmem:[#allocation3 + $0x48] sm:$0xff]
    %v288 = vld [vmem:[#allocation3 + $0x50] sm:$0xff]
    %v289 = vld [vmem:[#allocation3 + $0x58] sm:$0xff]
    %v290 = vld [vmem:[#allocation3 + $0x60] sm:$0xff]
    %v291 = vld [vmem:[#allocation3 + $0x68] sm:$0xff]
    %v292 = vld [vmem:[#allocation3 + $0x70] sm:$0xff]
    %v293 = vld [vmem:[#allocation3 + $0x78] sm:$0xff]
    %v294 = vld [vmem:[#allocation3 + $0x80] sm:$0xff]
    %v295 = vld [vmem:[#allocation3 + $0x88] sm:$0xff]
    %v296 = vld [vmem:[#allocation3 + $0x90] sm:$0xff]
    %v297 = vld [vmem:[#allocation3 + $0x98] sm:$0xff]
    %v298 = vld [vmem:[#allocation3 + $0xa0] sm:$0xff]
    %v299 = vld [vmem:[#allocation3 + $0xa8] sm:$0xff]
    %v300 = vld [vmem:[#allocation3 + $0xb0] sm:$0xff]
    %v301 = vld [vmem:[#allocation3 + $0xb8] sm:$0xff]
    %v302 = vld [vmem:[#allocation3 + $0xc0] sm:$0xff]
    %v303 = vld [vmem:[#allocation3 + $0xc8] sm:$0xff]
    %v304 = vld [vmem:[#allocation3 + $0xd0] sm:$0xff]
    %v305 = vld [vmem:[#allocation3 + $0xd8] sm:$0xff]
    %v306 = vld [vmem:[#allocation3 + $0xe0] sm:$0xff]
    %v307 = vld [vmem:[#allocation3 + $0xe8] sm:$0xff]
    %v308 = vld [vmem:[#allocation3 + $0xf0] sm:$0xff]
    %v309 = vld [vmem:[#allocation3 + $0xf8] sm:$0xff]
    %v310 = vld [vmem:[%s4] sm:$0x3]
    %v312 = vlaneseq
    %v313 = vshrl.u32 %v312, 7
    %v314 = vsub.s32 0, %v313
    %v315 = vrot.slane %v310, %v314
    %v316 = vlaneseq
    %v317 = vshrl.u32 %v316, 7
    %v318 = vsub.s32 1, %v317
    %v319 = vrot.slane %v310, %v318
    %v354 = vunpack.c.l.b16 %v278
    %v355 = vunpack.c.h.b16 %v278
    %v356 = vunpack.c.l.b16 %v279
    %v357 = vunpack.c.h.b16 %v279
    %v358 = vunpack.c.l.b16 %v280
    %v359 = vunpack.c.h.b16 %v280
    %v360 = vunpack.c.l.b16 %v281
    %v361 = vunpack.c.h.b16 %v281
    %v362 = vunpack.c.l.b16 %v282
    %v363 = vunpack.c.h.b16 %v282
    %v364 = vunpack.c.l.b16 %v283
    %v365 = vunpack.c.h.b16 %v283
    %v366 = vunpack.c.l.b16 %v284
    %v367 = vunpack.c.h.b16 %v284
    %v368 = vunpack.c.l.b16 %v285
    %v369 = vunpack.c.h.b16 %v285
    %v370 = vunpack.c.l.b16 %v286
    %v371 = vunpack.c.h.b16 %v286
    %v372 = vunpack.c.l.b16 %v287
    %v373 = vunpack.c.h.b16 %v287
    %v374 = vunpack.c.l.b16 %v288
    %v375 = vunpack.c.h.b16 %v288
    %v376 = vunpack.c.l.b16 %v289
    %v377 = vunpack.c.h.b16 %v289
    %v378 = vunpack.c.l.b16 %v290
    %v379 = vunpack.c.h.b16 %v290
    %v380 = vunpack.c.l.b16 %v291
    %v381 = vunpack.c.h.b16 %v291
    %v382 = vunpack.c.l.b16 %v292
    %v383 = vunpack.c.h.b16 %v292
    %v384 = vunpack.c.l.b16 %v293
    %v385 = vunpack.c.h.b16 %v293
    %v386 = vunpack.c.l.b16 %v294
    %v387 = vunpack.c.h.b16 %v294
    %v388 = vunpack.c.l.b16 %v295
    %v389 = vunpack.c.h.b16 %v295
    %v390 = vunpack.c.l.b16 %v296
    %v391 = vunpack.c.h.b16 %v296
    %v392 = vunpack.c.l.b16 %v297
    %v393 = vunpack.c.h.b16 %v297
    %v394 = vunpack.c.l.b16 %v298
    %v395 = vunpack.c.h.b16 %v298
    %v396 = vunpack.c.l.b16 %v299
    %v397 = vunpack.c.h.b16 %v299
    %v398 = vunpack.c.l.b16 %v300
    %v399 = vunpack.c.h.b16 %v300
    %v400 = vunpack.c.l.b16 %v301
    %v401 = vunpack.c.h.b16 %v301
    %v402 = vunpack.c.l.b16 %v302
    %v403 = vunpack.c.h.b16 %v302
    %v404 = vunpack.c.l.b16 %v303
    %v405 = vunpack.c.h.b16 %v303
    %v406 = vunpack.c.l.b16 %v304
    %v407 = vunpack.c.h.b16 %v304
    %v408 = vunpack.c.l.b16 %v305
    %v409 = vunpack.c.h.b16 %v305
    %v410 = vunpack.c.l.b16 %v306
    %v411 = vunpack.c.h.b16 %v306
    %v412 = vunpack.c.l.b16 %v307
    %v413 = vunpack.c.h.b16 %v307
    %v414 = vunpack.c.l.b16 %v308
    %v415 = vunpack.c.h.b16 %v308
    %v416 = vunpack.c.l.b16 %v309
    %v417 = vunpack.c.h.b16 %v309
    %v418 = vpack.c.b16 %v356, %v354
    %v419 = vpack.c.b16 %v357, %v355
    %v420 = vpack.c.b16 %v360, %v358
    %v421 = vpack.c.b16 %v361, %v359
    %v422 = vpack.c.b16 %v364, %v362
    %v423 = vpack.c.b16 %v365, %v363
    %v424 = vpack.c.b16 %v368, %v366
    %v425 = vpack.c.b16 %v369, %v367
    %v426 = vpack.c.b16 %v372, %v370
    %v427 = vpack.c.b16 %v373, %v371
    %v428 = vpack.c.b16 %v376, %v374
    %v429 = vpack.c.b16 %v377, %v375
    %v430 = vpack.c.b16 %v380, %v378
    %v431 = vpack.c.b16 %v381, %v379
    %v432 = vpack.c.b16 %v384, %v382
    %v433 = vpack.c.b16 %v385, %v383
    %v434 = vpack.c.b16 %v388, %v386
    %v435 = vpack.c.b16 %v389, %v387
    %v436 = vpack.c.b16 %v392, %v390
    %v437 = vpack.c.b16 %v393, %v391
    %v438 = vpack.c.b16 %v396, %v394
    %v439 = vpack.c.b16 %v397, %v395
    %v440 = vpack.c.b16 %v400, %v398
    %v441 = vpack.c.b16 %v401, %v399
    %v442 = vpack.c.b16 %v404, %v402
    %v443 = vpack.c.b16 %v405, %v403
    %v444 = vpack.c.b16 %v408, %v406
    %v445 = vpack.c.b16 %v409, %v407
    %v446 = vpack.c.b16 %v412, %v410
    %v447 = vpack.c.b16 %v413, %v411
    %v448 = vpack.c.b16 %v416, %v414
    %v449 = vpack.c.b16 %v417, %v415
    %482 = vmatprep.subr.bf16.mxu0 %v433
    %483 = vmatpush1.bf16.msra.mxu0 %v432
    %484 = vmatprep.subr.bf16.mxu0 %v431
    %485 = vmatpush1.bf16.msra.mxu0 %v430
    %486 = vmatprep.subr.bf16.mxu0 %v429
    %487 = vmatpush1.bf16.msra.mxu0 %v428
    %488 = vmatprep.subr.bf16.mxu0 %v427
    %489 = vmatpush1.bf16.msra.mxu0 %v426
    %490 = vmatprep.subr.bf16.mxu0 %v425
    %491 = vmatpush1.bf16.msra.mxu0 %v424
    %492 = vmatprep.subr.bf16.mxu0 %v423
    %493 = vmatpush1.bf16.msra.mxu0 %v422
    %494 = vmatprep.subr.bf16.mxu0 %v421
    %495 = vmatpush1.bf16.msra.mxu0 %v420
    %496 = vmatprep.subr.bf16.mxu0 %v419
    %497 = vmatpush1.bf16.msra.mxu0 %v418
    %498 = vmatprep.subr.bf16.mxu0 %v449
    %499 = vmatpush2.bf16.msra.mxu0 %v448
    %500 = vmatprep.subr.bf16.mxu0 %v447
    %501 = vmatpush2.bf16.msra.mxu0 %v446
    %502 = vmatprep.subr.bf16.mxu0 %v445
    %503 = vmatpush2.bf16.msra.mxu0 %v444
    %504 = vmatprep.subr.bf16.mxu0 %v443
    %505 = vmatpush2.bf16.msra.mxu0 %v442
    %506 = vmatprep.subr.bf16.mxu0 %v441
    %507 = vmatpush2.bf16.msra.mxu0 %v440
    %508 = vmatprep.subr.bf16.mxu0 %v439
    %509 = vmatpush2.bf16.msra.mxu0 %v438
    %510 = vmatprep.subr.bf16.mxu0 %v437
    %511 = vmatpush2.bf16.msra.mxu0 %v436
    %512 = vmatprep.subr.bf16.mxu0 %v435
    %513 = vmatpush2.bf16.msra.mxu0 %v434
    %514 = vmatprep.mubr.bf16.mxu0 %v263
    %515 = vmatmul.mubr.bf16.gmra.mxu0 %v262
    %v516 = vpop.f32.mrf.mxu0
    %v517 = vadd.f32 %v315, %v516
    %v518 = vpop.f32.mrf.mxu0
    %v519 = vadd.f32 %v319, %v518
    %v520 = vpop.f32.mrf.mxu0
    %v521 = vadd.f32 %v315, %v520
    %v522 = vpop.f32.mrf.mxu0
    %v523 = vadd.f32 %v319, %v522
    %524 = vmatprep.mubr.bf16.mxu0 %v265
    %525 = vmatmul.mubr.bf16.gmra.mxu0 %v264
    %v526 = vpop.f32.mrf.mxu0
    %v527 = vadd.f32 %v315, %v526
    %v528 = vpop.f32.mrf.mxu0
    %v529 = vadd.f32 %v319, %v528
    %v530 = vpop.f32.mrf.mxu0
    %v531 = vadd.f32 %v315, %v530
    %v532 = vpop.f32.mrf.mxu0
    %v533 = vadd.f32 %v319, %v532
    %534 = vmatprep.mubr.bf16.mxu0 %v267
    %535 = vmatmul.mubr.bf16.gmra.mxu0 %v266
    %v536 = vpop.f32.mrf.mxu0
    %v537 = vadd.f32 %v315, %v536
    %v538 = vpop.f32.mrf.mxu0
    %v539 = vadd.f32 %v319, %v538
    %v540 = vpop.f32.mrf.mxu0
    %v541 = vadd.f32 %v315, %v540
    %v542 = vpop.f32.mrf.mxu0
    %v543 = vadd.f32 %v319, %v542
    %544 = vmatprep.mubr.bf16.mxu0 %v269
    %545 = vmatmul.mubr.bf16.gmra.mxu0 %v268
    %v546 = vpop.f32.mrf.mxu0
    %v547 = vadd.f32 %v315, %v546
    %v548 = vpop.f32.mrf.mxu0
    %v549 = vadd.f32 %v319, %v548
    %v550 = vpop.f32.mrf.mxu0
    %v551 = vadd.f32 %v315, %v550
    %v552 = vpop.f32.mrf.mxu0
    %v553 = vadd.f32 %v319, %v552
    %554 = vmatprep.mubr.bf16.mxu0 %v271
    %555 = vmatmul.mubr.bf16.gmra.mxu0 %v270
    %v556 = vpop.f32.mrf.mxu0
    %v557 = vadd.f32 %v315, %v556
    %v558 = vpop.f32.mrf.mxu0
    %v559 = vadd.f32 %v319, %v558
    %v560 = vpop.f32.mrf.mxu0
    %v561 = vadd.f32 %v315, %v560
    %v562 = vpop.f32.mrf.mxu0
    %v563 = vadd.f32 %v319, %v562
    %564 = vmatprep.mubr.bf16.mxu0 %v273
    %565 = vmatmul.mubr.bf16.gmra.mxu0 %v272
    %v566 = vpop.f32.mrf.mxu0
    %v567 = vadd.f32 %v315, %v566
    %v568 = vpop.f32.mrf.mxu0
    %v569 = vadd.f32 %v319, %v568
    %v570 = vpop.f32.mrf.mxu0
    %v571 = vadd.f32 %v315, %v570
    %v572 = vpop.f32.mrf.mxu0
    %v573 = vadd.f32 %v319, %v572
    %574 = vmatprep.mubr.bf16.mxu0 %v275
    %575 = vmatmul.mubr.bf16.gmra.mxu0 %v274
    %v576 = vpop.f32.mrf.mxu0
    %v577 = vadd.f32 %v315, %v576
    %v578 = vpop.f32.mrf.mxu0
    %v579 = vadd.f32 %v319, %v578
    %v580 = vpop.f32.mrf.mxu0
    %v581 = vadd.f32 %v315, %v580
    %v582 = vpop.f32.mrf.mxu0
    %v583 = vadd.f32 %v319, %v582
    %584 = vmatprep.mubr.bf16.mxu0 %v277
    %585 = vmatmul.mubr.bf16.gmra.mxu0 %v276
    %v586 = vpop.f32.mrf.mxu0
    %v587 = vadd.f32 %v315, %v586
    %v588 = vpop.f32.mrf.mxu0
    %v589 = vadd.f32 %v319, %v588
    %v590 = vpop.f32.mrf.mxu0
    %v591 = vadd.f32 %v315, %v590
    %v592 = vpop.f32.mrf.mxu0
    %v593 = vadd.f32 %v319, %v592
    %594 = vdwg.mxu0
    %v595 = vmax.f32 %v517, 0.0
    %v596 = vmax.f32 %v519, 0.0
    %v597 = vmax.f32 %v521, 0.0
    %v598 = vmax.f32 %v523, 0.0
    %v599 = vmax.f32 %v527, 0.0
    %v600 = vmax.f32 %v529, 0.0
    %v601 = vmax.f32 %v531, 0.0
    %v602 = vmax.f32 %v533, 0.0
    %v603 = vmax.f32 %v537, 0.0
    %v604 = vmax.f32 %v539, 0.0
    %v605 = vmax.f32 %v541, 0.0
    %v606 = vmax.f32 %v543, 0.0
    %v607 = vmax.f32 %v547, 0.0
    %v608 = vmax.f32 %v549, 0.0
    %v609 = vmax.f32 %v551, 0.0
    %v610 = vmax.f32 %v553, 0.0
    %v611 = vmax.f32 %v557, 0.0
    %v612 = vmax.f32 %v559, 0.0
    %v613 = vmax.f32 %v561, 0.0
    %v614 = vmax.f32 %v563, 0.0
    %v615 = vmax.f32 %v567, 0.0
    %v616 = vmax.f32 %v569, 0.0
    %v617 = vmax.f32 %v571, 0.0
    %v618 = vmax.f32 %v573, 0.0
    %v619 = vmax.f32 %v577, 0.0
    %v620 = vmax.f32 %v579, 0.0
    %v621 = vmax.f32 %v581, 0.0
    %v622 = vmax.f32 %v583, 0.0
    %v623 = vmax.f32 %v587, 0.0
    %v624 = vmax.f32 %v589, 0.0
    %v625 = vmax.f32 %v591, 0.0
    %v626 = vmax.f32 %v593, 0.0
    %v627 = vpack.c.bf16 %v597, %v595
    %v628 = vpack.c.bf16 %v598, %v596
    %v629 = vpack.c.bf16 %v601, %v599
    %v630 = vpack.c.bf16 %v602, %v600
    %v631 = vpack.c.bf16 %v605, %v603
    %v632 = vpack.c.bf16 %v606, %v604
    %v633 = vpack.c.bf16 %v609, %v607
    %v634 = vpack.c.bf16 %v610, %v608
    %v635 = vpack.c.bf16 %v613, %v611
    %v636 = vpack.c.bf16 %v614, %v612
    %v637 = vpack.c.bf16 %v617, %v615
    %v638 = vpack.c.bf16 %v618, %v616
    %v639 = vpack.c.bf16 %v621, %v619
    %v640 = vpack.c.bf16 %v622, %v620
    %v641 = vpack.c.bf16 %v625, %v623
    %v642 = vpack.c.bf16 %v626, %v624
    %v643 = vld [vmem:[%s5] sm:$0xf]
    %v644 = vld [vmem:[%s5 + $0x4] sm:$0xf]
    %v645 = vld [vmem:[%s5 + $0x8] sm:$0xf]
    %v646 = vld [vmem:[%s5 + $0xc] sm:$0xf]
    %v647 = vld [vmem:[%s5 + $0x10] sm:$0xf]
    %v648 = vld [vmem:[%s5 + $0x14] sm:$0xf]
    %v649 = vld [vmem:[%s5 + $0x18] sm:$0xf]
    %v650 = vld [vmem:[%s5 + $0x1c] sm:$0xf]
    %v651 = vld [vmem:[%s5 + $0x20] sm:$0xf]
    %v652 = vld [vmem:[%s5 + $0x24] sm:$0xf]
    %v653 = vld [vmem:[%s5 + $0x28] sm:$0xf]
    %v654 = vld [vmem:[%s5 + $0x2c] sm:$0xf]
    %v655 = vld [vmem:[%s5 + $0x30] sm:$0xf]
    %v656 = vld [vmem:[%s5 + $0x34] sm:$0xf]
    %v657 = vld [vmem:[%s5 + $0x38] sm:$0xf]
    %v658 = vld [vmem:[%s5 + $0x3c] sm:$0xf]
    %v659 = vld [vmem:[%s5 + $0x40] sm:$0xf]
    %v660 = vld [vmem:[%s5 + $0x44] sm:$0xf]
    %v661 = vld [vmem:[%s5 + $0x48] sm:$0xf]
    %v662 = vld [vmem:[%s5 + $0x4c] sm:$0xf]
    %v663 = vld [vmem:[%s5 + $0x50] sm:$0xf]
    %v664 = vld [vmem:[%s5 + $0x54] sm:$0xf]
    %v665 = vld [vmem:[%s5 + $0x58] sm:$0xf]
    %v666 = vld [vmem:[%s5 + $0x5c] sm:$0xf]
    %v667 = vld [vmem:[%s5 + $0x60] sm:$0xf]
    %v668 = vld [vmem:[%s5 + $0x64] sm:$0xf]
    %v669 = vld [vmem:[%s5 + $0x68] sm:$0xf]
    %v670 = vld [vmem:[%s5 + $0x6c] sm:$0xf]
    %v671 = vld [vmem:[%s5 + $0x70] sm:$0xf]
    %v672 = vld [vmem:[%s5 + $0x74] sm:$0xf]
    %v673 = vld [vmem:[%s5 + $0x78] sm:$0xf]
    %v674 = vld [vmem:[%s5 + $0x7c] sm:$0xf]
    %s675 = sld [smem:[#allocation2]]
    %v676 = vstv %s675
    %v709 = vunpack.c.l.b16 %v643
    %v710 = vunpack.c.l.b16 %v644
    %v711 = vunpack.c.l.b16 %v645
    %v712 = vunpack.c.l.b16 %v646
    %v713 = vunpack.c.l.b16 %v647
    %v714 = vunpack.c.l.b16 %v648
    %v715 = vunpack.c.l.b16 %v649
    %v716 = vunpack.c.l.b16 %v650
    %v717 = vunpack.c.l.b16 %v651
    %v718 = vunpack.c.l.b16 %v652
    %v719 = vunpack.c.l.b16 %v653
    %v720 = vunpack.c.l.b16 %v654
    %v721 = vunpack.c.l.b16 %v655
    %v722 = vunpack.c.l.b16 %v656
    %v723 = vunpack.c.l.b16 %v657
    %v724 = vunpack.c.l.b16 %v658
    %v725 = vunpack.c.l.b16 %v659
    %v726 = vunpack.c.l.b16 %v660
    %v727 = vunpack.c.l.b16 %v661
    %v728 = vunpack.c.l.b16 %v662
    %v729 = vunpack.c.l.b16 %v663
    %v730 = vunpack.c.l.b16 %v664
    %v731 = vunpack.c.l.b16 %v665
    %v732 = vunpack.c.l.b16 %v666
    %v733 = vunpack.c.l.b16 %v667
    %v734 = vunpack.c.l.b16 %v668
    %v735 = vunpack.c.l.b16 %v669
    %v736 = vunpack.c.l.b16 %v670
    %v737 = vunpack.c.l.b16 %v671
    %v738 = vunpack.c.l.b16 %v672
    %v739 = vunpack.c.l.b16 %v673
    %v740 = vunpack.c.l.b16 %v674
    %v741 = vpack.c.b16 %v710, %v709
    %v742 = vpack.c.b16 %v712, %v711
    %v743 = vpack.c.b16 %v714, %v713
    %v744 = vpack.c.b16 %v716, %v715
    %v745 = vpack.c.b16 %v718, %v717
    %v746 = vpack.c.b16 %v720, %v719
    %v747 = vpack.c.b16 %v722, %v721
    %v748 = vpack.c.b16 %v724, %v723
    %v749 = vpack.c.b16 %v726, %v725
    %v750 = vpack.c.b16 %v728, %v727
    %v751 = vpack.c.b16 %v730, %v729
    %v752 = vpack.c.b16 %v732, %v731
    %v753 = vpack.c.b16 %v734, %v733
    %v754 = vpack.c.b16 %v736, %v735
    %v755 = vpack.c.b16 %v738, %v737
    %v756 = vpack.c.b16 %v740, %v739
    %773 = vmatprep.subr.bf16.mxu0 0
    %774 = vmatpush1.bf16.msra.mxu0 %v748
    %775 = vmatprep.subr.bf16.mxu0 0
    %776 = vmatpush1.bf16.msra.mxu0 %v747
    %777 = vmatprep.subr.bf16.mxu0 0
    %778 = vmatpush1.bf16.msra.mxu0 %v746
    %779 = vmatprep.subr.bf16.mxu0 0
    %780 = vmatpush1.bf16.msra.mxu0 %v745
    %781 = vmatprep.subr.bf16.mxu0 0
    %782 = vmatpush1.bf16.msra.mxu0 %v744
    %783 = vmatprep.subr.bf16.mxu0 0
    %784 = vmatpush1.bf16.msra.mxu0 %v743
    %785 = vmatprep.subr.bf16.mxu0 0
    %786 = vmatpush1.bf16.msra.mxu0 %v742
    %787 = vmatprep.subr.bf16.mxu0 0
    %788 = vmatpush1.bf16.msra.mxu0 %v741
    %789 = vmatprep.subr.bf16.mxu0 0
    %790 = vmatpush2.bf16.msra.mxu0 %v756
    %791 = vmatprep.subr.bf16.mxu0 0
    %792 = vmatpush2.bf16.msra.mxu0 %v755
    %793 = vmatprep.subr.bf16.mxu0 0
    %794 = vmatpush2.bf16.msra.mxu0 %v754
    %795 = vmatprep.subr.bf16.mxu0 0
    %796 = vmatpush2.bf16.msra.mxu0 %v753
    %797 = vmatprep.subr.bf16.mxu0 0
    %798 = vmatpush2.bf16.msra.mxu0 %v752
    %799 = vmatprep.subr.bf16.mxu0 0
    %800 = vmatpush2.bf16.msra.mxu0 %v751
    %801 = vmatprep.subr.bf16.mxu0 0
    %802 = vmatpush2.bf16.msra.mxu0 %v750
    %803 = vmatprep.subr.bf16.mxu0 0
    %804 = vmatpush2.bf16.msra.mxu0 %v749
    %805 = vmatprep.mubr.bf16.mxu0 %v628
    %806 = vmatmul.mubr.bf16.gmra.mxu0 %v627
    %v807 = vpop.f32.mrf.mxu0
    %v808 = vadd.f32 %v676, %v807
    %v809 = vpop.f32.mrf.mxu0
    %v810 = vpop.f32.mrf.mxu0
    %v811 = vadd.f32 %v676, %v810
    %v812 = vpop.f32.mrf.mxu0
    %813 = vmatprep.mubr.bf16.mxu0 %v630
    %814 = vmatmul.mubr.bf16.gmra.mxu0 %v629
    %v815 = vpop.f32.mrf.mxu0
    %v816 = vadd.f32 %v676, %v815
    %v817 = vpop.f32.mrf.mxu0
    %v818 = vpop.f32.mrf.mxu0
    %v819 = vadd.f32 %v676, %v818
    %v820 = vpop.f32.mrf.mxu0
    %821 = vmatprep.mubr.bf16.mxu0 %v632
    %822 = vmatmul.mubr.bf16.gmra.mxu0 %v631
    %v823 = vpop.f32.mrf.mxu0
    %v824 = vadd.f32 %v676, %v823
    %v825 = vpop.f32.mrf.mxu0
    %v826 = vpop.f32.mrf.mxu0
    %v827 = vadd.f32 %v676, %v826
    %v828 = vpop.f32.mrf.mxu0
    %829 = vmatprep.mubr.bf16.mxu0 %v634
    %830 = vmatmul.mubr.bf16.gmra.mxu0 %v633
    %v831 = vpop.f32.mrf.mxu0
    %v832 = vadd.f32 %v676, %v831
    %v833 = vpop.f32.mrf.mxu0
    %v834 = vpop.f32.mrf.mxu0
    %v835 = vadd.f32 %v676, %v834
    %v836 = vpop.f32.mrf.mxu0
    %837 = vmatprep.mubr.bf16.mxu0 %v636
    %838 = vmatmul.mubr.bf16.gmra.mxu0 %v635
    %v839 = vpop.f32.mrf.mxu0
    %v840 = vadd.f32 %v676, %v839
    %v841 = vpop.f32.mrf.mxu0
    %v842 = vpop.f32.mrf.mxu0
    %v843 = vadd.f32 %v676, %v842
    %v844 = vpop.f32.mrf.mxu0
    %845 = vmatprep.mubr.bf16.mxu0 %v638
    %846 = vmatmul.mubr.bf16.gmra.mxu0 %v637
    %v847 = vpop.f32.mrf.mxu0
    %v848 = vadd.f32 %v676, %v847
    %v849 = vpop.f32.mrf.mxu0
    %v850 = vpop.f32.mrf.mxu0
    %v851 = vadd.f32 %v676, %v850
    %v852 = vpop.f32.mrf.mxu0
    %853 = vmatprep.mubr.bf16.mxu0 %v640
    %854 = vmatmul.mubr.bf16.gmra.mxu0 %v639
    %v855 = vpop.f32.mrf.mxu0
    %v856 = vadd.f32 %v676, %v855
    %v857 = vpop.f32.mrf.mxu0
    %v858 = vpop.f32.mrf.mxu0
    %v859 = vadd.f32 %v676, %v858
    %v860 = vpop.f32.mrf.mxu0
    %861 = vmatprep.mubr.bf16.mxu0 %v642
    %862 = vmatmul.mubr.bf16.gmra.mxu0 %v641
    %v863 = vpop.f32.mrf.mxu0
    %v864 = vadd.f32 %v676, %v863
    %v865 = vpop.f32.mrf.mxu0
    %v866 = vpop.f32.mrf.mxu0
    %v867 = vadd.f32 %v676, %v866
    %v868 = vpop.f32.mrf.mxu0
    %869 = vdwg.mxu0
    %870 = vst [vmem:[#allocation6] sm:$0xff] %v808
    %871 = vst [vmem:[#allocation6 + $0x8] sm:$0xff] %v811
    %872 = vst [vmem:[#allocation6 + $0x10] sm:$0xff] %v816
    %873 = vst [vmem:[#allocation6 + $0x18] sm:$0xff] %v819
    %874 = vst [vmem:[#allocation6 + $0x20] sm:$0xff] %v824
    %875 = vst [vmem:[#allocation6 + $0x28] sm:$0xff] %v827
    %876 = vst [vmem:[#allocation6 + $0x30] sm:$0xff] %v832
    %877 = vst [vmem:[#allocation6 + $0x38] sm:$0xff] %v835
    %878 = vst [vmem:[#allocation6 + $0x40] sm:$0xff] %v840
    %879 = vst [vmem:[#allocation6 + $0x48] sm:$0xff] %v843
    %880 = vst [vmem:[#allocation6 + $0x50] sm:$0xff] %v848
    %881 = vst [vmem:[#allocation6 + $0x58] sm:$0xff] %v851
    %882 = vst [vmem:[#allocation6 + $0x60] sm:$0xff] %v856
    %883 = vst [vmem:[#allocation6 + $0x68] sm:$0xff] %v859
    %884 = vst [vmem:[#allocation6 + $0x70] sm:$0xff] %v864
    %885 = vst [vmem:[#allocation6 + $0x78] sm:$0xff] %v867
    // Predicated region
    $region34: #{tpu_custom_call.1} parent=1 // pred_check
      _
    $region35: #{tpu_custom_call.1} parent=1 // pred_check_branch
      %887 = sbr.rel (0) target = $region37
    $region36: #{tpu_custom_call.1} parent=1 // pred_region
      %s889 = ssub.s32 2048, 2048
      %890 = vsyncadd [#allocation5], %s889
      %s891 = sshll.u32 [#allocation6], 4
      %s892 = int_to_ptr.vmem [resolvable:$true] %s891
      %897 = dma.vmem_to_hbm [thread:$0]  %s892, 2048, %s7, [#allocation5], 128, 128, 8
    $region37: #{tpu_custom_call.1} parent=1 // pred_fallthru
      _
    // Predicated region
    $region38: #{tpu_custom_call.1} parent=1 // pred_check
      _
    $region39: #{tpu_custom_call.1} parent=1 // pred_check_branch
      %899 = sbr.rel (0) target = $region41
    $region40: #{tpu_custom_call.1} parent=1 // pred_region
      %900 = dma.done [#allocation5], 2048
    $region41: #{tpu_custom_call.1} parent=1 // pred_fallthru
      _
    %901 = vsyncpa [#allocation4], 1
    %902 = vsyncpa [#allocation5], 1

</llo_original>
